<compile_context>
chip_gen: v5e
topology: v5e:2x2
jax: 0.10.0
libtpu: 0.0.40
codegen_flags: <defaults>
</compile_context>

<pallas_src>
import functools

import jax
import jax.numpy as jnp
from jax import lax
from jax.experimental import pallas as pl
from jax.experimental.pallas import tpu as pltpu

LANES = 128
TILE_ROWS = 4096                 # (4096, 128) f32 = 2 MiB per input per pipeline buffer
NUM_SPLITS = 2                   # leading "parallel" grid axis (both TensorCores on v7x)
VMEM_LIMIT = 32 * 1024 * 1024    # explicit scoped-VMEM budget (v5e default is 16 MiB)


def _focal_elementwise(x, t, alpha, gamma):
    """Numerically stable focal loss, elementwise, f32 in / f32 out."""
    e = jnp.exp(-jnp.abs(x))
    # softplus(-|x|) = log1p(exp(-|x|)) to ~1e-7 accuracy using only
    # exp/log/VALU ops: for e < 0.01 the series e - e^2/2 (rel. err <= e^2/3),
    # otherwise log(1+e) has abs err <= f32 eps.  Matches PyTorch's stable
    # BCE-with-logits form without depending on a log1p lowering rule.
    softplus = jnp.where(e < 0.01, e * (1.0 - 0.5 * e), jnp.log(1.0 + e))
    bce = jnp.maximum(x, 0.0) - x * t + softplus
    pt = jnp.exp(-bce)
    one_minus_pt = 1.0 - pt

    if float(gamma) == int(gamma):
        # Integer power -> lax.integer_pow -> VALU muls (x*x for gamma=2).
        focal = lax.integer_pow(one_minus_pt, int(gamma))
    else:
        # Non-integral gamma: guard 1-pt against rounding slightly negative
        # (pow would yield NaN); costs two extra EUP transcendentals.
        focal = jnp.power(jnp.maximum(one_minus_pt, 0.0), jnp.float32(gamma))

    loss = focal * bce
    if alpha != 1:
        loss = jnp.float32(alpha) * loss
    return loss


# ---------------------------------------------------------------------------
# Reduction ('mean' / 'sum') kernel: per-split (8,128) partial sums.
# ---------------------------------------------------------------------------
def _focal_sum_kernel(x_ref, t_ref, out_ref, acc_ref, *, tr, bp, nblocks,
                      valid_rows_last, alpha, gamma, need_mask, has_overflow):
    s = pl.program_id(0)          # split index ("parallel"; both TCs on v7x)
    i = pl.program_id(1)          # row-block within this split ("arbitrary")

    @pl.when(i == 0)
    def _():
        acc_ref[...] = jnp.zeros_like(acc_ref)

    block = s * bp + i
    x = x_ref[...].astype(jnp.float32)
    t = t_ref[...].astype(jnp.float32)
    loss = _focal_elementwise(x, t, alpha, gamma)

    def accumulate(vals):
        # Pure-VALU accumulation into a single (8,128) vreg; no cross-lane /
        # cross-sublane reduce anywhere in the steady state.
        if tr % 8 == 0:
            acc_ref[...] += vals.reshape(tr // 8, 8, LANES).sum(axis=0)
        else:
            # Only reachable in the tiny single-block case (tr == rows < 8k).
            acc_ref[0:1, :] += vals.sum(axis=0, keepdims=True)

    last = nblocks - 1
    if need_mask:
        # Only the final (partial boundary) block carries out-of-range rows;
        # every other block accumulates unmasked (no per-step iota/select).
        @pl.when(block == last)
        def _():
            row_ids = lax.broadcasted_iota(jnp.int32, (tr, LANES), 0)
            accumulate(jnp.where(row_ids < valid_rows_last, loss, 0.0))

        @pl.when(block < last)
        def _():
            accumulate(loss)
        # block > last: overflow step of an uneven split -> contributes nothing.
    elif has_overflow:
        @pl.when(block < nblocks)
        def _():
            accumulate(loss)
    else:
        accumulate(loss)

    @pl.when(i == pl.num_programs(1) - 1)
    def _():
        out_ref[...] = acc_ref[...]


def _focal_sum(x2d, t2d, *, tr, nblocks, num_splits, bp, valid_rows_last,
               alpha, gamma):
    need_mask = valid_rows_last != tr           # last block is partial
    has_overflow = num_splits * bp != nblocks   # uneven 2-way split

    kernel = functools.partial(
        _focal_sum_kernel, tr=tr, bp=bp, nblocks=nblocks,
        valid_rows_last=valid_rows_last, alpha=alpha, gamma=gamma,
        need_mask=need_mask, has_overflow=has_overflow)

    if has_overflow:
        last = nblocks - 1
        # Overflow steps re-fetch (clamped) the last valid block; the kernel
        # skips their accumulation, so both v7x cores stay busy with no OOB DMA.
        in_map = lambda s, i: (jnp.minimum(s * bp + i, last), 0)
    else:
        in_map = lambda s, i: (s * bp + i, 0)

    partials = pl.pallas_call(
        kernel,
        out_shape=jax.ShapeDtypeStruct((num_splits * 8, LANES), jnp.float32),
        grid_spec=pltpu.PrefetchScalarGridSpec(
            num_scalar_prefetch=0,
            grid=(num_splits, bp),
            in_specs=[
                pl.BlockSpec((tr, LANES), in_map),
                pl.BlockSpec((tr, LANES), in_map),
            ],
            # Fully (8,128)-aligned, lane-dense per-split output block: no
            # masked sub-lane store and no (1,1)-block layout concerns; the
            # tiny final scalar reduce happens in the wrapper.
            out_specs=pl.BlockSpec((8, LANES), lambda s, i: (s, 0)),
            scratch_shapes=[pltpu.VMEM((8, LANES), jnp.float32)],
        ),
        compiler_params=pltpu.CompilerParams(
            dimension_semantics=("parallel", "arbitrary"),
            vmem_limit_bytes=VMEM_LIMIT),
    )(x2d, t2d)
    return jnp.sum(partials)


# ---------------------------------------------------------------------------
# Elementwise ('none') kernel: output in the input dtype (cast on store).
# ---------------------------------------------------------------------------
def _focal_none_kernel(x_ref, t_ref, o_ref, *, alpha, gamma):
    x = x_ref[...].astype(jnp.float32)
    t = t_ref[...].astype(jnp.float32)
    o_ref[...] = _focal_elementwise(x, t, alpha, gamma).astype(o_ref.dtype)


def _focal_none(x2d, t2d, *, tr, nblocks, alpha, gamma, out_dtype):
    kernel = functools.partial(_focal_none_kernel, alpha=alpha, gamma=gamma)
    return pl.pallas_call(
        kernel,
        out_shape=jax.ShapeDtypeStruct(x2d.shape, out_dtype),
        grid_spec=pltpu.PrefetchScalarGridSpec(
            num_scalar_prefetch=0,
            grid=(nblocks,),
            in_specs=[
                pl.BlockSpec((tr, LANES), lambda i: (i, 0)),
                pl.BlockSpec((tr, LANES), lambda i: (i, 0)),
            ],
            out_specs=pl.BlockSpec((tr, LANES), lambda i: (i, 0)),
        ),
        compiler_params=pltpu.CompilerParams(
            dimension_semantics=("parallel",),
            vmem_limit_bytes=VMEM_LIMIT),
    )(x2d, t2d)


# ---------------------------------------------------------------------------
# Wrapper mirroring the PyTorch module.
# ---------------------------------------------------------------------------
class FocalLoss:
    """Mirror of the PyTorch FocalLoss module (no parameters)."""

    def __init__(self, alpha=1, gamma=2, reduction="mean"):
        self.alpha = alpha
        self.gamma = gamma
        self.reduction = reduction

    def __call__(self, inputs, targets):
        n = int(inputs.size)
        elementwise = self.reduction not in ("mean", "sum")
        if jnp.issubdtype(inputs.dtype, jnp.floating):
            none_dtype = inputs.dtype
        else:
            none_dtype = jnp.float32

        if targets.dtype == jnp.bool_:
            # TODO(synk): pass bool targets straight through (zero-copy) once
            # i1 pallas operands are verified on this Mosaic version; int8
            # keeps the extra HBM traffic to 1 B/elem and the f32 cast stays
            # in-kernel.
            targets = targets.astype(jnp.int8)

        x_flat = jnp.ravel(inputs)      # bitcast reshape, copy-free
        t_flat = jnp.ravel(targets)

        rem = n % LANES
        n_main = n - rem

        # <=127-element ragged tail handled with plain jnp in the wrapper.
        tail_loss = None
        if rem:
            tail_loss = _focal_elementwise(
                x_flat[n_main:].astype(jnp.float32),
                t_flat[n_main:].astype(jnp.float32),
                self.alpha, self.gamma)

        main_sum = None
        main_none = None
        if n_main:
            if rem:
                # TODO(synk): the prefix slice still materializes one copy for
                # lane-unaligned numel; the common aligned case is copy-free
                # (and there is never a padded whole-array copy).
                x_flat = x_flat[:n_main]
                t_flat = t_flat[:n_main]
            rows = n_main // LANES
            tr = TILE_ROWS if rows >= TILE_ROWS else rows   # full-array block when small
            nblocks = pl.cdiv(rows, tr)
            valid_rows_last = rows - (nblocks - 1) * tr

            x2d = x_flat.reshape(rows, LANES)
            t2d = t_flat.reshape(rows, LANES)

            if elementwise:
                main_none = _focal_none(
                    x2d, t2d, tr=tr, nblocks=nblocks,
                    alpha=self.alpha, gamma=self.gamma, out_dtype=none_dtype)
            else:
                # Always split the row blocks 2-way when there are >=2 of them
                # so both v7x TensorCores stay busy, even for odd block counts.
                num_splits = NUM_SPLITS if nblocks >= NUM_SPLITS else 1
                bp = pl.cdiv(nblocks, num_splits)
                main_sum = _focal_sum(
                    x2d, t2d, tr=tr, nblocks=nblocks, num_splits=num_splits,
                    bp=bp, valid_rows_last=valid_rows_last,
                    alpha=self.alpha, gamma=self.gamma)

        if elementwise:
            pieces = []
            if main_none is not None:
                pieces.append(main_none.reshape(-1))
            if tail_loss is not None:
                pieces.append(tail_loss.astype(none_dtype))
            flat = pieces[0] if len(pieces) == 1 else jnp.concatenate(pieces)
            return flat.reshape(inputs.shape)

        total = jnp.float32(0.0)
        if main_sum is not None:
            total = total + main_sum
        if tail_loss is not None:
            total = total + jnp.sum(tail_loss)

        if self.reduction == "mean":
            return total / jnp.float32(n)
        return total   # 'sum'


def _reference(inputs, targets, alpha=1, gamma=2, reduction="mean"):
    # Pure-JAX reference (same math as torch F.binary_cross_entropy_with_logits).
    x = inputs.astype(jnp.float32)
    t = targets.astype(jnp.float32)
    bce = jnp.maximum(x, 0.0) - x * t + jnp.log1p(jnp.exp(-jnp.abs(x)))
    pt = jnp.exp(-bce)
    loss = alpha * (1.0 - pt) ** gamma * bce
    if reduction == "mean":
        return loss.mean()
    if reduction == "sum":
        return loss.sum()
    return loss


if __name__ == "__main__":
    key = jax.random.PRNGKey(0)
    k1, k2, k3, k4, k5, k6 = jax.random.split(key, 6)

    # --- Small NCHW case matching typical usage of the PyTorch module. ---
    x = jax.random.normal(k1, (2, 4, 16, 16), dtype=jnp.float32)
    tgt = (jax.random.uniform(k2, (2, 4, 16, 16)) > 0.5).astype(jnp.float32)

    loss = jax.block_until_ready(FocalLoss(alpha=1, gamma=2, reduction="mean")(x, tgt))
    ref = _reference(x, tgt, reduction="mean")
    assert jnp.allclose(loss, ref, atol=1e-5, rtol=1e-4), (loss, ref)

    loss_none = jax.block_until_ready(FocalLoss(reduction="none")(x, tgt))
    ref_none = _reference(x, tgt, reduction="none")
    assert loss_none.shape == x.shape and loss_none.dtype == x.dtype
    assert jnp.allclose(loss_none, ref_none, atol=1e-5, rtol=1e-4)

    # --- Lane-unaligned numel (5000 = 39*128 + 8): single full-array block with
    #     a non-multiple-of-8 row count plus the plain-jnp tail path. ---
    xb = jax.random.normal(k3, (5, 1000), dtype=jnp.float32)
    tb = (jax.random.uniform(k4, (5, 1000)) > 0.5).astype(jnp.float32)
    loss_b = jax.block_until_ready(FocalLoss(alpha=0.25, reduction="sum")(xb, tb))
    ref_b = _reference(xb, tb, alpha=0.25, reduction="sum")
    assert jnp.allclose(loss_b, ref_b, atol=1e-2, rtol=1e-4), (loss_b, ref_b)

    loss_bn = jax.block_until_ready(FocalLoss(reduction="none")(xb, tb))
    assert jnp.allclose(loss_bn, _reference(xb, tb, reduction="none"),
                        atol=1e-5, rtol=1e-4)

    # --- Large bf16 case: multiple (4096,128) blocks, uneven 2-way TC split
    #     (3 blocks across 2 splits), partial boundary block, ragged tail, and
    #     the in-kernel bf16->f32 upcast (no wrapper upcast / no padding). ---
    n_big = TILE_ROWS * 2 * LANES + 5 * LANES + 37
    xl = jax.random.normal(k5, (n_big,), dtype=jnp.bfloat16)
    tl = (jax.random.uniform(k6, (n_big,)) > 0.5).astype(jnp.float32)
    loss_l = jax.block_until_ready(FocalLoss(reduction="sum")(xl, tl))
    ref_l = _reference(xl, tl, reduction="sum")
    assert jnp.allclose(loss_l, ref_l, atol=1e-2, rtol=1e-4), (loss_l, ref_l)

    loss_ln = jax.block_until_ready(FocalLoss(reduction="none")(xl, tl))
    assert loss_ln.dtype == jnp.bfloat16          # dtype parity with PyTorch
    assert jnp.allclose(loss_ln.astype(jnp.float32),
                        _reference(xl, tl, reduction="none"),
                        atol=2e-2, rtol=2e-2)

    print("KERNEL_OK")
</pallas_src>

<mosaic_0001>
module attributes {stable_mosaic.version = 11 : i64} {
  func.func @_focal_sum_kernel(%arg0: i32, %arg1: i32, %arg2: memref<16x128xf32, #tpu.memory_space<vmem>>, %arg3: memref<16x128xf32, #tpu.memory_space<vmem>>, %arg4: memref<8x128xf32, #tpu.memory_space<vmem>>, %arg5: memref<8x128xf32, #tpu.memory_space<vmem>>) attributes {dimension_semantics = [#tpu.dimension_semantics<parallel>, #tpu.dimension_semantics<arbitrary>], iteration_bounds = array<i64: 1, 1>, scalar_prefetch = 0 : i64, scratch_operands = 1 : i64, tpu.core_type = #tpu.core_type<tc>, window_params = [{transform_indices = @transform_0, window_bounds = array<i64: 16, 128>}, {transform_indices = @transform_1, window_bounds = array<i64: 16, 128>}, {transform_indices = @transform_2, window_bounds = array<i64: 8, 128>}]} {
    %c0_i32 = arith.constant 0 : i32
    %0 = arith.cmpi eq, %arg1, %c0_i32 : i32
    %1 = arith.extui %0 : i1 to i32
    %c0_i32_0 = arith.constant 0 : i32
    %2 = arith.cmpi ne, %1, %c0_i32_0 : i32
    scf.if %2 {
      %cst_18 = arith.constant 0.000000e+00 : f32
      %40 = vector.broadcast %cst_18 : f32 to vector<8x128xf32>
      %c0_19 = arith.constant 0 : index
      %c0_20 = arith.constant 0 : index
      %41 = vector.load %arg5[%c0_19, %c0_20] : memref<8x128xf32, #tpu.memory_space<vmem>>, vector<8x128xf32>
      tpu.vector_store %arg5[%c0_19, %c0_20], %40 {strides = array<i32>} : memref<8x128xf32, #tpu.memory_space<vmem>>, vector<8x128xf32>,
    } else {
    }
    %c0 = arith.constant 0 : index
    %c0_1 = arith.constant 0 : index
    %3 = vector.load %arg2[%c0, %c0_1] : memref<16x128xf32, #tpu.memory_space<vmem>>, vector<16x128xf32>
    %c0_2 = arith.constant 0 : index
    %c0_3 = arith.constant 0 : index
    %4 = vector.load %arg3[%c0_2, %c0_3] : memref<16x128xf32, #tpu.memory_space<vmem>>, vector<16x128xf32>
    %5 = math.absf %3 : vector<16x128xf32>
    %cst = arith.constant 0.000000e+00 : f32
    %6 = vector.broadcast %cst : f32 to vector<16x128xf32>
    %7 = arith.subf %6, %5 : vector<16x128xf32>
    %8 = math.exp %7 : vector<16x128xf32>
    %cst_4 = arith.constant 0.00999999977 : f32
    %9 = vector.broadcast %cst_4 : f32 to vector<16x128xf32>
    %10 = arith.cmpf olt, %8, %9 : vector<16x128xf32>
    %cst_5 = arith.constant 5.000000e-01 : f32
    %11 = vector.broadcast %cst_5 : f32 to vector<16x128xf32>
    %12 = arith.mulf %11, %8 : vector<16x128xf32>
    %cst_6 = arith.constant 1.000000e+00 : f32
    %13 = vector.broadcast %cst_6 : f32 to vector<16x128xf32>
    %14 = arith.subf %13, %12 : vector<16x128xf32>
    %15 = arith.mulf %8, %14 : vector<16x128xf32>
    %cst_7 = arith.constant 1.000000e+00 : f32
    %16 = vector.broadcast %cst_7 : f32 to vector<16x128xf32>
    %17 = arith.addf %16, %8 : vector<16x128xf32>
    %18 = math.log %17 : vector<16x128xf32>
    %19 = arith.select %10, %15, %18 : vector<16x128xi1>, vector<16x128xf32>
    %cst_8 = arith.constant 0.000000e+00 : f32
    %20 = vector.broadcast %cst_8 : f32 to vector<16x128xf32>
    %21 = arith.maximumf %3, %20 : vector<16x128xf32>
    %22 = arith.mulf %3, %4 : vector<16x128xf32>
    %23 = arith.subf %21, %22 : vector<16x128xf32>
    %24 = arith.addf %23, %19 : vector<16x128xf32>
    %cst_9 = arith.constant 0.000000e+00 : f32
    %25 = vector.broadcast %cst_9 : f32 to vector<16x128xf32>
    %26 = arith.subf %25, %24 : vector<16x128xf32>
    %27 = math.exp %26 : vector<16x128xf32>
    %cst_10 = arith.constant 1.000000e+00 : f32
    %28 = vector.broadcast %cst_10 : f32 to vector<16x128xf32>
    %29 = arith.subf %28, %27 : vector<16x128xf32>
    %30 = arith.mulf %29, %29 : vector<16x128xf32>
    %31 = arith.mulf %30, %24 : vector<16x128xf32>
    %c0_11 = arith.constant 0 : index
    %c0_12 = arith.constant 0 : index
    %32 = vector.load %arg5[%c0_11, %c0_12] : memref<8x128xf32, #tpu.memory_space<vmem>>, vector<8x128xf32>
    %33 = vector.shape_cast %31 : vector<16x128xf32> to vector<2x8x128xf32>
    %cst_13 = arith.constant dense<0.000000e+00> : vector<8x128xf32>
    %34 = vector.multi_reduction <add>, %33, %cst_13 [0] : vector<2x8x128xf32> to vector<8x128xf32>
    %35 = arith.addf %32, %34 : vector<8x128xf32>
    %c0_14 = arith.constant 0 : index
    %c0_15 = arith.constant 0 : index
    %36 = vector.load %arg5[%c0_14, %c0_15] : memref<8x128xf32, #tpu.memory_space<vmem>>, vector<8x128xf32>
    tpu.vector_store %arg5[%c0_14, %c0_15], %35 {strides = array<i32>} : memref<8x128xf32, #tpu.memory_space<vmem>>, vector<8x128xf32>,
    %c0_i32_16 = arith.constant 0 : i32
    %37 = arith.cmpi eq, %arg1, %c0_i32_16 : i32
    %38 = arith.extui %37 : i1 to i32
    %c0_i32_17 = arith.constant 0 : i32
    %39 = arith.cmpi ne, %38, %c0_i32_17 : i32
    scf.if %39 {
      %c0_18 = arith.constant 0 : index
      %c0_19 = arith.constant 0 : index
      %40 = vector.load %arg5[%c0_18, %c0_19] : memref<8x128xf32, #tpu.memory_space<vmem>>, vector<8x128xf32>
      %c0_20 = arith.constant 0 : index
      %c0_21 = arith.constant 0 : index
      %41 = vector.load %arg4[%c0_20, %c0_21] : memref<8x128xf32, #tpu.memory_space<vmem>>, vector<8x128xf32>
      tpu.vector_store %arg4[%c0_20, %c0_21], %40 {strides = array<i32>} : memref<8x128xf32, #tpu.memory_space<vmem>>, vector<8x128xf32>,
    } else {
    }
    return
  }
  func.func @transform_0(%arg0: i32, %arg1: i32) -> (i32, i32) {
    %c1_i32 = arith.constant 1 : i32
    %0 = arith.muli %arg0, %c1_i32 : i32
    %1 = arith.addi %0, %arg1 : i32
    %c0_i32 = arith.constant 0 : i32
    %c0_i32_0 = arith.constant 0 : i32
    return %1, %c0_i32 : i32, i32
  }
  func.func @transform_1(%arg0: i32, %arg1: i32) -> (i32, i32) {
    %c1_i32 = arith.constant 1 : i32
    %0 = arith.muli %arg0, %c1_i32 : i32
    %1 = arith.addi %0, %arg1 : i32
    %c0_i32 = arith.constant 0 : i32
    %c0_i32_0 = arith.constant 0 : i32
    return %1, %c0_i32 : i32, i32
  }
  func.func @transform_2(%arg0: i32, %arg1: i32) -> (i32, i32) {
    %c0_i32 = arith.constant 0 : i32
    %c0_i32_0 = arith.constant 0 : i32
    return %arg0, %c0_i32 : i32, i32
  }
}

</mosaic_0001>

<llo_original>
// kernel: tpu_custom_call.1
$region0: #{tpu_custom_call.1}
  #allocation0 [shape = 'u32[]', space=smem, size = 0x4, offset = 0x4, fixed_abs, tag = 'smem constant byte address 0x4 - core index']
  #allocation1 [shape = 'u32[72,128]{1,0:T(1,128)}', space=vmem, size = 0x9000, scoped, tag = 'internal scratch']
  #allocation2 [shape = 'f32[8,128]{1,0:T(8,128)}', space=vmem, size = 0x1000, scoped, tag = 'scratch operand']
  %s0 = inlined_call_operand.hbm [shape: f32[16,128], index: 0, kind: input, shape index: {}]
  %s1 = inlined_call_operand.hbm [shape: f32[16,128], index: 1, kind: input, shape index: {}]
  %s2 = inlined_call_operand.hbm [shape: f32[8,128], index: 2, kind: output, shape index: {}]
  %s3 = sld [smem:[#allocation0]]
  $region34: #{tpu_custom_call.1} parent=0
    _
  %s5 = ssub.s32 1, %s3
  %s6 = scalar_select 0, %s5, %s3
  $region1: #{tpu_custom_call.1} parent=0
    #allocation3 [shape = 'u8[8192]{0}', space=vmem, size = 0x2000, scoped, tag = 'input window, operand 0, single buffered']
    #allocation4 [shape = 's32[1]{0}', space=sflag, size = 0x4, scoped, tag = 'scoped memory for tpu_custom_call.1']
    #allocation5 [shape = 's32[1]{0}', space=sflag, size = 0x4, scoped, tag = 'scoped memory for tpu_custom_call.1']
    #allocation6 [shape = 'u8[8192]{0}', space=vmem, size = 0x2000, scoped, tag = 'input window, operand 1, single buffered']
    #allocation7 [shape = 's32[1]{0}', space=sflag, size = 0x4, scoped, tag = 'scoped memory for tpu_custom_call.1']
    #allocation8 [shape = 'u8[4096]{0}', space=vmem, size = 0x1000, scoped, tag = 'output window, operand 0, single buffered']
    %7 = vsyncpa [#allocation4], 0
    %8 = vsyncpa [#allocation7], 0
    %9 = vsyncpa [#allocation5], 0
    // Predicated region
    $region2: #{tpu_custom_call.1} parent=1 // pred_check
      _
    $region3: #{tpu_custom_call.1} parent=1 // pred_check_branch
      %11 = sbr.rel (0) target = $region5
    $region4: #{tpu_custom_call.1} parent=1 // pred_region
      %s12 = sadd.s32 0, 0
      %s13 = smul.u32 2, %s12
      %15 = vsyncadd [#allocation4], 0
      %s16 = smul.addr %s13, 8
      %s17 = scalar_lea.hbm %s0, %s16
      %s18 = sshll.u32 %s17, 4
      %s19 = int_to_ptr.hbm [resolvable:$true] %s18
      %s20 = sshll.u32 [#allocation3], 4
      %s21 = int_to_ptr.vmem [resolvable:$true] %s20
      %26 = dma.hbm_to_vmem [thread:$0]  %s19, 256, %s21, [#allocation4], 128, 128, 8
    $region5: #{tpu_custom_call.1} parent=1 // pred_fallthru
      _
    // Predicated region
    $region6: #{tpu_custom_call.1} parent=1 // pred_check
      _
    $region7: #{tpu_custom_call.1} parent=1 // pred_check_branch
      %28 = sbr.rel (0) target = $region9
    $region8: #{tpu_custom_call.1} parent=1 // pred_region
      %s29 = sadd.s32 0, 0
      %s30 = smul.u32 2, %s29
      %32 = vsyncadd [#allocation7], 0
      %s33 = smul.addr %s30, 8
      %s34 = scalar_lea.hbm %s1, %s33
      %s35 = sshll.u32 %s34, 4
      %s36 = int_to_ptr.hbm [resolvable:$true] %s35
      %s37 = sshll.u32 [#allocation6], 4
      %s38 = int_to_ptr.vmem [resolvable:$true] %s37
      %43 = dma.hbm_to_vmem [thread:$0]  %s36, 256, %s38, [#allocation7], 128, 128, 8
    $region9: #{tpu_custom_call.1} parent=1 // pred_fallthru
      _
    // Predicated region
    $region10: #{tpu_custom_call.1} parent=1 // pred_check
      _
    $region11: #{tpu_custom_call.1} parent=1 // pred_check_branch
      %45 = sbr.rel (0) target = $region13
    $region12: #{tpu_custom_call.1} parent=1 // pred_region
      %47 = dma.done [#allocation4], 256
    $region13: #{tpu_custom_call.1} parent=1 // pred_fallthru
      _
    // Predicated region
    $region14: #{tpu_custom_call.1} parent=1 // pred_check
      _
    $region15: #{tpu_custom_call.1} parent=1 // pred_check_branch
      %49 = sbr.rel (0) target = $region17
    $region16: #{tpu_custom_call.1} parent=1 // pred_region
      %51 = dma.done [#allocation7], 256
    $region17: #{tpu_custom_call.1} parent=1 // pred_fallthru
      _
    %s52 = sadd.s32 0, 0
    %s53 = smul.u32 2, %s52
    %s54 = sadd.s32 0, 0
    %s55 = smul.u32 2, %s54
    %p56 = scmp.eq.s32.totalorder 0, 0
    // Predicated region
    $region18: #{tpu_custom_call.1} parent=1 // pred_check
      %p57 = pneg %p56
    $region19: #{tpu_custom_call.1} parent=1 // pred_check_branch
      %59 = sbr.rel (%p57) target = $region21
    $region20: #{tpu_custom_call.1} parent=1 // pred_region
      %60 = vst [vmem:[#allocation2] sm:$0xff] 0.0
    $region21: #{tpu_custom_call.1} parent=1 // pred_fallthru
      _
    %v61 = vld [vmem:[#allocation3] sm:$0xff]
    %v62 = vld [vmem:[#allocation3 + $0x8] sm:$0xff]
    %v63 = vld [vmem:[#allocation6] sm:$0xff]
    %v64 = vld [vmem:[#allocation6 + $0x8] sm:$0xff]
    %v65 = vand.u32 2147483647, %v61
    %v66 = vand.u32 2147483647, %v62
    %v67 = vsub.f32 0.0, %v65
    %v68 = vsub.f32 0.0, %v66
    %v69 = vmul.f32 %v67, 1.442695
    %v70 = vpow.pop %v69
    %v71 = vmul.f32 %v68, 1.442695
    %v72 = vpow.pop %v71
    %vm73 = vcmp.lt.f32.partialorder %v70, 0.01
    %vm74 = vcmp.lt.f32.partialorder %v72, 0.01
    %v75 = vmul.f32 %v70, 0.5
    %v76 = vmul.f32 %v72, 0.5
    %v77 = vsub.f32 1.0, %v75
    %v78 = vsub.f32 1.0, %v76
    %v79 = vmul.f32 %v70, %v77
    %v80 = vmul.f32 %v72, %v78
    %v81 = vadd.f32 %v70, 1.0
    %v82 = vadd.f32 %v72, 1.0
    %v83 = vlog2.pop %v81
    %v84 = vmul.f32 %v83, 0.6931472
    %v85 = vlog2.pop %v82
    %v86 = vmul.f32 %v85, 0.6931472
    %v87 = vsel %vm73, %v79, %v84
    %v88 = vsel %vm74, %v80, %v86
    %v89 = vmax.f32 %v61, 0.0
    %v90 = vmax.f32 %v62, 0.0
    %v91 = vmul.f32 %v61, %v63
    %v92 = vmul.f32 %v62, %v64
    %v93 = vsub.f32 %v89, %v91
    %v94 = vsub.f32 %v90, %v92
    %v95 = vadd.f32 %v93, %v87
    %v96 = vadd.f32 %v94, %v88
    %v97 = vsub.f32 0.0, %v95
    %v98 = vsub.f32 0.0, %v96
    %v99 = vmul.f32 %v97, 1.442695
    %v100 = vpow.pop %v99
    %v101 = vmul.f32 %v98, 1.442695
    %v102 = vpow.pop %v101
    %v103 = vsub.f32 1.0, %v100
    %v104 = vsub.f32 1.0, %v102
    %v105 = vmul.f32 %v103, %v103
    %v106 = vmul.f32 %v104, %v104
    %v107 = vmul.f32 %v105, %v95
    %v108 = vmul.f32 %v106, %v96
    %v109 = vld [vmem:[#allocation2] sm:$0xff]
    %v110 = vadd.f32 %v107, %v108
    %v111 = vadd.f32 %v109, %v110
    %112 = vst [vmem:[#allocation2] sm:$0xff] %v111
    // Predicated region
    $region22: #{tpu_custom_call.1} parent=1 // pred_check
      %p113 = pneg %p56
    $region23: #{tpu_custom_call.1} parent=1 // pred_check_branch
      %115 = sbr.rel (%p113) target = $region25
    $region24: #{tpu_custom_call.1} parent=1 // pred_region
      %v116 = vld [vmem:[#allocation2] sm:$0xff]
      %117 = vst [vmem:[#allocation8] sm:$0xff] %v116
    $region25: #{tpu_custom_call.1} parent=1 // pred_fallthru
      _
    // Predicated region
    $region26: #{tpu_custom_call.1} parent=1 // pred_check
      _
    $region27: #{tpu_custom_call.1} parent=1 // pred_check_branch
      %119 = sbr.rel (0) target = $region29
    $region28: #{tpu_custom_call.1} parent=1 // pred_region
      %121 = vsyncadd [#allocation5], 0
      %s123 = sshll.u32 [#allocation8], 4
      %s124 = int_to_ptr.vmem [resolvable:$true] %s123
      %s125 = sshll.u32 %s2, 4
      %s126 = int_to_ptr.hbm [resolvable:$true] %s125
      %128 = dma.vmem_to_hbm [thread:$0]  %s124, 128, %s126, [#allocation5]
    $region29: #{tpu_custom_call.1} parent=1 // pred_fallthru
      _
    // Predicated region
    $region30: #{tpu_custom_call.1} parent=1 // pred_check
      _
    $region31: #{tpu_custom_call.1} parent=1 // pred_check_branch
      %130 = sbr.rel (0) target = $region33
    $region32: #{tpu_custom_call.1} parent=1 // pred_region
      %132 = dma.done [#allocation5], 128
    $region33: #{tpu_custom_call.1} parent=1 // pred_fallthru
      _
    %133 = vsyncpa [#allocation4], 1
    %134 = vsyncpa [#allocation7], 1
    %135 = vsyncpa [#allocation5], 1

</llo_original>
